<compile_context>
chip_gen: v7x
topology: tpu7x:2x2x1
jax: 0.10.0
libtpu: 0.0.40
codegen_flags: <defaults>
</compile_context>

<pallas_src>
import functools

import jax
import jax.numpy as jnp
from jax.experimental import pallas as pl
from jax.experimental.pallas import tpu as pltpu

EXPLICIT_WEIGHT = 0.5
IMPLICIT_WEIGHT = 0.5
REG_WEIGHT = 1e-05

_LANE = 128
_SUB = 8


def _round_up(x, m):
    return (x + m - 1) // m * m


def _device_kind():
    try:
        return jax.devices()[0].device_kind.lower()
    except Exception:
        return ""


def _multitask_loss_kernel(scores_ref, e0_ref, e1_ref, e2_ref, out_ref,
                           mse_acc, bpr_acc, reg_acc,
                           *, batch, tile_b, num_embeddings):
    c = pl.program_id(0)          # chunk (megacore-parallel axis)
    t = pl.program_id(1)          # batch tile within chunk (reduction axis)
    nt = pl.num_programs(1)

    @pl.when(t == 0)
    def _init():
        mse_acc[...] = jnp.zeros_like(mse_acc)
        bpr_acc[...] = jnp.zeros_like(bpr_acc)
        reg_acc[...] = jnp.zeros_like(reg_acc)

    # Global batch offset of this tile (chunks laid out consecutively).
    tile_start = (c * nt + t) * tile_b

    # ---- scores tile: (4, tile_b); rows = [pred, target, pos, neg] ----
    s = scores_ref[...].astype(jnp.float32)

    # MSE partial: padded lanes are zero-padded in the wrapper (0-0 = 0), so
    # no mask is needed; accumulate per-lane partials (VALU only, no XLU).
    diff = s[0:1, :] - s[1:2, :]
    mse_acc[...] += diff * diff

    # BPR partial: padded lanes DO need masking (log(sigmoid(0)+1e-8) != 0).
    lane_idx = jax.lax.broadcasted_iota(jnp.int32, (1, tile_b), 1) + tile_start
    lane_mask = lane_idx < batch
    margin = s[2:3, :] - s[3:4, :]
    # Keep the exact reference semantics: log(sigmoid(x) + 1e-8).
    # TODO(synk): -log1p(exp(-x)) is cheaper/stabler if the 1e-8 epsilon
    # semantics can be relaxed (changes results at ~1e-8 level).
    log_sig = jnp.log(jax.nn.sigmoid(margin) + 1e-8)
    bpr_acc[...] += jnp.where(lane_mask, log_sig, 0.0)

    # ---- embeddings tile: (tile_b, D) each; padded rows are zero so their
    #      squares contribute nothing — no masks. Per tile this is only a
    #      sublane collapse (mostly VALU vreg adds); the cross-lane (XLU)
    #      reduce happens once in finalize.
    for e_ref in (e0_ref, e1_ref, e2_ref):
        e = e_ref[...].astype(jnp.float32)
        reg_acc[...] += jnp.sum(e * e, axis=0, keepdims=True)

    @pl.when(t == nt - 1)
    def _finalize():
        inv_b = 1.0 / batch
        mse = jnp.sum(mse_acc[...]) * inv_b
        bpr = -(jnp.sum(bpr_acc[...]) * inv_b)
        reg = (REG_WEIGHT / num_embeddings) * jnp.sum(reg_acc[...])
        total = EXPLICIT_WEIGHT * mse + IMPLICIT_WEIGHT * bpr + reg
        # Lane-padded per-chunk partial (each chunk's slab is a disjoint,
        # lane-dense write); the wrapper reads lane 0 and sums over chunks.
        out_ref[...] = jnp.full(out_ref.shape, total, dtype=out_ref.dtype)


def multitask_loss(explicit_pred, explicit_target,
                   implicit_pos_scores, implicit_neg_scores,
                   embeddings, *, batch_tile=None, num_chunks=None):
    """JAX wrapper. Score tensors: shape (B,). embeddings: list of 3 (B, D)."""
    assert len(embeddings) == 3, "this kernel is specialized for 3 embeddings"
    B = explicit_pred.shape[0]
    D = embeddings[0].shape[-1]

    # Stack the 4 score vectors into one (4, B) operand (single DMA stream,
    # one double-buffer instead of four; it is only ~4*B elements of extra
    # HBM traffic). Native dtypes are kept; the kernel upcasts internally.
    scores = jnp.stack([explicit_pred, explicit_target,
                        implicit_pos_scores, implicit_neg_scores], axis=0)
    e0, e1, e2 = embeddings

    # ---- device-generation defaults -------------------------------------
    kind = _device_kind()
    is_v7 = "v7" in kind
    is_old = ("v2" in kind) or ("v3" in kind)
    if num_chunks is None:
        # v7x has 2 TensorCores sharing HBM bandwidth -> split the batch in
        # two parallel chunks; v5e/v6e are single-TC so the chunk axis would
        # only add init/finalize overhead and padding waste.
        num_chunks = 2 if is_v7 else 1
    if is_v7:
        budget, vmem_cap = 24 << 20, 48 << 20     # 64 MiB physical; leave headroom
    elif is_old:
        budget, vmem_cap = 10 << 20, 16 << 20     # conservative v2/v3 fallback
    else:
        budget, vmem_cap = 48 << 20, 96 << 20     # v4/v5e/v6e: 128 MiB physical
    try:  # refine cap from the actual chip if available
        phys = pltpu.get_tpu_info().vmem_capacity_bytes
        vmem_cap = min(vmem_cap, int(phys * 3) // 4)
        budget = min(budget, vmem_cap)
    except Exception:
        pass

    # ---- tile sizing: grow to fill the budget (blocks are double-buffered) --
    score_item = jnp.dtype(scores.dtype).itemsize
    d_pad = _round_up(max(D, 1), _LANE)   # lane-padded layout footprint
    bytes_per_row = (sum(d_pad * jnp.dtype(e.dtype).itemsize for e in (e0, e1, e2))
                     + _SUB * score_item)
    b_cap = _round_up(B, _LANE)

    if batch_tile is None:
        tb = (budget // (2 * bytes_per_row)) // _LANE * _LANE
        tb = max(_LANE, min(tb, b_cap))
    else:
        tb = min(_round_up(batch_tile, _LANE), b_cap)
        while tb > _LANE and 2 * tb * bytes_per_row > budget:
            tb = max(_LANE, (tb // 2) // _LANE * _LANE)
    # TODO(synk): for huge D (bf16 D >~ 16k on v7x) even tb=128 overflows the
    # budget; a D (feature) grid axis with partial reg accumulation is needed.
    # TODO(synk): for D < 128 the (8,128) tiled layout wastes lanes on the
    # dominant stream; a fused lane-dense producer layout would fix that.

    total_tiles = pl.cdiv(B, tb)
    nc = max(1, min(num_chunks, total_tiles))   # megacore chunks
    nt = pl.cdiv(total_tiles, nc)
    Bp = nc * nt * tb

    if Bp != B:
        # Zero-pad; the kernel relies on zero-padding for MSE/reg and masks
        # only the BPR term.
        scores = jnp.pad(scores, ((0, 0), (0, Bp - B)))
        e0 = jnp.pad(e0, ((0, Bp - B), (0, 0)))
        e1 = jnp.pad(e1, ((0, Bp - B), (0, 0)))
        e2 = jnp.pad(e2, ((0, Bp - B), (0, 0)))

    kernel = functools.partial(_multitask_loss_kernel,
                               batch=B, tile_b=tb, num_embeddings=3)

    score_spec = pl.BlockSpec((4, tb), lambda c, t: (0, c * nt + t))
    emb_spec = pl.BlockSpec((tb, D), lambda c, t: (c * nt + t, 0))
    out_spec = pl.BlockSpec((1, 1, _LANE), lambda c, t: (c, 0, 0))

    block_total = tb * bytes_per_row
    scratch_bytes = 2 * tb * 4 + _SUB * d_pad * 4
    vmem_limit = int(min(vmem_cap,
                         max(32 << 20, 2 * block_total + scratch_bytes + (4 << 20))))

    partials = pl.pallas_call(
        kernel,
        out_shape=jax.ShapeDtypeStruct((nc, 1, _LANE), jnp.float32),
        grid_spec=pltpu.PrefetchScalarGridSpec(
            num_scalar_prefetch=0,
            grid=(nc, nt),
            in_specs=[score_spec, emb_spec, emb_spec, emb_spec],
            out_specs=out_spec,
            scratch_shapes=[
                pltpu.VMEM((1, tb), jnp.float32),   # per-lane MSE partials
                pltpu.VMEM((1, tb), jnp.float32),   # per-lane BPR partials
                pltpu.VMEM((1, D), jnp.float32),    # per-lane reg partials
            ],
        ),
        compiler_params=pltpu.CompilerParams(
            dimension_semantics=("parallel", "arbitrary"),
            vmem_limit_bytes=vmem_limit,
        ),
    )(scores, e0, e1, e2)

    # Each chunk's partial already carries its weights/means (linear), so the
    # cross-chunk combine is a tiny sum in the wrapper.
    return jnp.sum(partials[:, 0, 0])


def _reference(explicit_pred, explicit_target, pos, neg, embeddings):
    mse = jnp.mean((explicit_pred - explicit_target) ** 2)
    bpr = -jnp.mean(jnp.log(jax.nn.sigmoid(pos - neg) + 1e-8))
    reg = sum(jnp.sum(e.astype(jnp.float32) ** 2) for e in embeddings)
    reg = REG_WEIGHT * reg / len(embeddings)
    return EXPLICIT_WEIGHT * mse + IMPLICIT_WEIGHT * bpr + reg


if __name__ == "__main__":
    key = jax.random.PRNGKey(0)
    ks = jax.random.split(key, 14)

    # ---- test 1: small shapes, auto tile sizing, single tile / chunk ----
    B, D = 8, 32
    explicit_pred = jax.random.normal(ks[0], (B,), jnp.float32) * 2.0 + 3.0
    explicit_target = jax.random.uniform(ks[1], (B,), jnp.float32, 1.0, 5.0)
    implicit_pos_scores = jax.random.normal(ks[2], (B,), jnp.float32) + 0.5
    implicit_neg_scores = jax.random.normal(ks[3], (B,), jnp.float32) - 0.5
    embeddings = [
        jax.random.normal(ks[4], (B, D), jnp.float32) * 0.1,  # user embeddings
        jax.random.normal(ks[5], (B, D), jnp.float32) * 0.1,  # pos item embeddings
        jax.random.normal(ks[6], (B, D), jnp.float32) * 0.1,  # neg item embeddings
    ]

    loss = multitask_loss(explicit_pred, explicit_target,
                          implicit_pos_scores, implicit_neg_scores,
                          embeddings)
    loss = jax.block_until_ready(loss)
    ref = _reference(explicit_pred, explicit_target,
                     implicit_pos_scores, implicit_neg_scores, embeddings)
    assert jnp.allclose(loss, ref, rtol=1e-5, atol=1e-6), (loss, ref)

    # ---- test 2: exercises multi-tile accumulation, padding/masking,
    #      explicit batch_tile, chunked partial sums, bf16 inputs ----
    B2, D2 = 300, 64
    pred2 = jax.random.normal(ks[7], (B2,), jnp.float32) * 2.0 + 3.0
    targ2 = jax.random.uniform(ks[8], (B2,), jnp.float32, 1.0, 5.0)
    pos2 = jax.random.normal(ks[9], (B2,), jnp.float32) + 0.5
    neg2 = jax.random.normal(ks[10], (B2,), jnp.float32) - 0.5
    emb2 = [jax.random.normal(ks[11 + i], (B2, D2), jnp.float32).astype(jnp.bfloat16) * 0.1
            for i in range(3)]

    loss2 = multitask_loss(pred2, targ2, pos2, neg2, emb2,
                           batch_tile=128, num_chunks=2)
    loss2 = jax.block_until_ready(loss2)
    ref2 = _reference(pred2, targ2, pos2, neg2, emb2)
    assert jnp.allclose(loss2, ref2, rtol=1e-4, atol=1e-5), (loss2, ref2)

    print("KERNEL_OK")
</pallas_src>

<mosaic_0001>
module attributes {stable_mosaic.version = 11 : i64} {
  func.func @_multitask_loss_kernel(%arg0: i32, %arg1: i32, %arg2: memref<4x128xf32, #tpu.memory_space<vmem>>, %arg3: memref<128x32xf32, #tpu.memory_space<vmem>>, %arg4: memref<128x32xf32, #tpu.memory_space<vmem>>, %arg5: memref<128x32xf32, #tpu.memory_space<vmem>>, %arg6: memref<1x1x128xf32, #tpu.memory_space<vmem>>, %arg7: memref<1x128xf32, #tpu.memory_space<vmem>>, %arg8: memref<1x128xf32, #tpu.memory_space<vmem>>, %arg9: memref<1x32xf32, #tpu.memory_space<vmem>>) attributes {dimension_semantics = [#tpu.dimension_semantics<parallel>, #tpu.dimension_semantics<arbitrary>], iteration_bounds = array<i64: 1, 1>, scalar_prefetch = 0 : i64, scratch_operands = 3 : i64, tpu.core_type = #tpu.core_type<tc>, window_params = [{transform_indices = @transform_0, window_bounds = array<i64: 4, 128>}, {transform_indices = @transform_1, window_bounds = array<i64: 128, 32>}, {transform_indices = @transform_2, window_bounds = array<i64: 128, 32>}, {transform_indices = @transform_3, window_bounds = array<i64: 128, 32>}, {transform_indices = @transform_4, window_bounds = array<i64: 1, 1, 128>}]} {
    %c0_i32 = arith.constant 0 : i32
    %0 = arith.cmpi eq, %arg1, %c0_i32 : i32
    %1 = arith.extui %0 : i1 to i32
    %c0_i32_0 = arith.constant 0 : i32
    %2 = arith.cmpi ne, %1, %c0_i32_0 : i32
    scf.if %2 {
      %cst_35 = arith.constant 0.000000e+00 : f32
      %59 = vector.broadcast %cst_35 : f32 to vector<1x128xf32>
      %c0_36 = arith.constant 0 : index
      %c0_37 = arith.constant 0 : index
      %60 = vector.load %arg7[%c0_36, %c0_37] : memref<1x128xf32, #tpu.memory_space<vmem>>, vector<1x128xf32>
      tpu.vector_store %arg7[%c0_36, %c0_37], %59 {strides = array<i32>} : memref<1x128xf32, #tpu.memory_space<vmem>>, vector<1x128xf32>,
      %cst_38 = arith.constant 0.000000e+00 : f32
      %61 = vector.broadcast %cst_38 : f32 to vector<1x128xf32>
      %c0_39 = arith.constant 0 : index
      %c0_40 = arith.constant 0 : index
      %62 = vector.load %arg8[%c0_39, %c0_40] : memref<1x128xf32, #tpu.memory_space<vmem>>, vector<1x128xf32>
      tpu.vector_store %arg8[%c0_39, %c0_40], %61 {strides = array<i32>} : memref<1x128xf32, #tpu.memory_space<vmem>>, vector<1x128xf32>,
      %cst_41 = arith.constant 0.000000e+00 : f32
      %63 = vector.broadcast %cst_41 : f32 to vector<1x32xf32>
      %c0_42 = arith.constant 0 : index
      %c0_43 = arith.constant 0 : index
      %64 = vector.load %arg9[%c0_42, %c0_43] : memref<1x32xf32, #tpu.memory_space<vmem>>, vector<1x32xf32>
      tpu.vector_store %arg9[%c0_42, %c0_43], %63 {strides = array<i32>} : memref<1x32xf32, #tpu.memory_space<vmem>>, vector<1x32xf32>,
    } else {
    }
    %c1_i32 = arith.constant 1 : i32
    %3 = arith.muli %arg0, %c1_i32 : i32
    %4 = arith.addi %3, %arg1 : i32
    %c128_i32 = arith.constant 128 : i32
    %5 = arith.muli %4, %c128_i32 : i32
    %c0 = arith.constant 0 : index
    %c0_1 = arith.constant 0 : index
    %6 = vector.load %arg2[%c0, %c0_1] : memref<4x128xf32, #tpu.memory_space<vmem>>, vector<4x128xf32>
    %7 = vector.extract_strided_slice %6 {offsets = [0, 0], sizes = [1, 128], strides = [1, 1]} : vector<4x128xf32> to vector<1x128xf32>
    %8 = vector.extract_strided_slice %6 {offsets = [1, 0], sizes = [1, 128], strides = [1, 1]} : vector<4x128xf32> to vector<1x128xf32>
    %9 = arith.subf %7, %8 : vector<1x128xf32>
    %c0_2 = arith.constant 0 : index
    %c0_3 = arith.constant 0 : index
    %10 = vector.load %arg7[%c0_2, %c0_3] : memref<1x128xf32, #tpu.memory_space<vmem>>, vector<1x128xf32>
    %11 = arith.mulf %9, %9 : vector<1x128xf32>
    %12 = arith.addf %10, %11 : vector<1x128xf32>
    %c0_4 = arith.constant 0 : index
    %c0_5 = arith.constant 0 : index
    %13 = vector.load %arg7[%c0_4, %c0_5] : memref<1x128xf32, #tpu.memory_space<vmem>>, vector<1x128xf32>
    tpu.vector_store %arg7[%c0_4, %c0_5], %12 {strides = array<i32>} : memref<1x128xf32, #tpu.memory_space<vmem>>, vector<1x128xf32>,
    %14 = tpu.iota {dimensions = array<i32: 1>} : vector<1x128xi32>
    %15 = vector.broadcast %5 : i32 to vector<1x128xi32>
    %16 = arith.addi %14, %15 : vector<1x128xi32>
    %c8_i32 = arith.constant 8 : i32
    %17 = vector.broadcast %c8_i32 : i32 to vector<1x128xi32>
    %18 = arith.cmpi slt, %16, %17 : vector<1x128xi32>
    %19 = vector.extract_strided_slice %6 {offsets = [2, 0], sizes = [1, 128], strides = [1, 1]} : vector<4x128xf32> to vector<1x128xf32>
    %20 = vector.extract_strided_slice %6 {offsets = [3, 0], sizes = [1, 128], strides = [1, 1]} : vector<4x128xf32> to vector<1x128xf32>
    %21 = arith.subf %19, %20 : vector<1x128xf32>
    %22 = arith.negf %21 : vector<1x128xf32>
    %23 = math.exp %22 : vector<1x128xf32>
    %cst = arith.constant 1.000000e+00 : f32
    %24 = vector.broadcast %cst : f32 to vector<1x128xf32>
    %25 = arith.addf %24, %23 : vector<1x128xf32>
    %26 = arith.divf %24, %25 : vector<1x128xf32>
    %cst_6 = arith.constant 9.99999993E-9 : f32
    %27 = vector.broadcast %cst_6 : f32 to vector<1x128xf32>
    %28 = arith.addf %26, %27 : vector<1x128xf32>
    %29 = math.log %28 : vector<1x128xf32>
    %c0_7 = arith.constant 0 : index
    %c0_8 = arith.constant 0 : index
    %30 = vector.load %arg8[%c0_7, %c0_8] : memref<1x128xf32, #tpu.memory_space<vmem>>, vector<1x128xf32>
    %cst_9 = arith.constant 0.000000e+00 : f32
    %31 = vector.broadcast %cst_9 : f32 to vector<1x128xf32>
    %32 = arith.select %18, %29, %31 : vector<1x128xi1>, vector<1x128xf32>
    %33 = arith.addf %30, %32 : vector<1x128xf32>
    %c0_10 = arith.constant 0 : index
    %c0_11 = arith.constant 0 : index
    %34 = vector.load %arg8[%c0_10, %c0_11] : memref<1x128xf32, #tpu.memory_space<vmem>>, vector<1x128xf32>
    tpu.vector_store %arg8[%c0_10, %c0_11], %33 {strides = array<i32>} : memref<1x128xf32, #tpu.memory_space<vmem>>, vector<1x128xf32>,
    %c0_12 = arith.constant 0 : index
    %c0_13 = arith.constant 0 : index
    %35 = vector.load %arg3[%c0_12, %c0_13] : memref<128x32xf32, #tpu.memory_space<vmem>>, vector<128x32xf32>
    %c0_14 = arith.constant 0 : index
    %c0_15 = arith.constant 0 : index
    %36 = vector.load %arg9[%c0_14, %c0_15] : memref<1x32xf32, #tpu.memory_space<vmem>>, vector<1x32xf32>
    %37 = arith.mulf %35, %35 : vector<128x32xf32>
    %cst_16 = arith.constant dense<0.000000e+00> : vector<32xf32>
    %38 = vector.multi_reduction <add>, %37, %cst_16 [0] : vector<128x32xf32> to vector<32xf32>
    %39 = vector.shape_cast %38 : vector<32xf32> to vector<1x32xf32>
    %40 = arith.addf %36, %39 : vector<1x32xf32>
    %c0_17 = arith.constant 0 : index
    %c0_18 = arith.constant 0 : index
    %41 = vector.load %arg9[%c0_17, %c0_18] : memref<1x32xf32, #tpu.memory_space<vmem>>, vector<1x32xf32>
    tpu.vector_store %arg9[%c0_17, %c0_18], %40 {strides = array<i32>} : memref<1x32xf32, #tpu.memory_space<vmem>>, vector<1x32xf32>,
    %c0_19 = arith.constant 0 : index
    %c0_20 = arith.constant 0 : index
    %42 = vector.load %arg4[%c0_19, %c0_20] : memref<128x32xf32, #tpu.memory_space<vmem>>, vector<128x32xf32>
    %c0_21 = arith.constant 0 : index
    %c0_22 = arith.constant 0 : index
    %43 = vector.load %arg9[%c0_21, %c0_22] : memref<1x32xf32, #tpu.memory_space<vmem>>, vector<1x32xf32>
    %44 = arith.mulf %42, %42 : vector<128x32xf32>
    %cst_23 = arith.constant dense<0.000000e+00> : vector<32xf32>
    %45 = vector.multi_reduction <add>, %44, %cst_23 [0] : vector<128x32xf32> to vector<32xf32>
    %46 = vector.shape_cast %45 : vector<32xf32> to vector<1x32xf32>
    %47 = arith.addf %43, %46 : vector<1x32xf32>
    %c0_24 = arith.constant 0 : index
    %c0_25 = arith.constant 0 : index
    %48 = vector.load %arg9[%c0_24, %c0_25] : memref<1x32xf32, #tpu.memory_space<vmem>>, vector<1x32xf32>
    tpu.vector_store %arg9[%c0_24, %c0_25], %47 {strides = array<i32>} : memref<1x32xf32, #tpu.memory_space<vmem>>, vector<1x32xf32>,
    %c0_26 = arith.constant 0 : index
    %c0_27 = arith.constant 0 : index
    %49 = vector.load %arg5[%c0_26, %c0_27] : memref<128x32xf32, #tpu.memory_space<vmem>>, vector<128x32xf32>
    %c0_28 = arith.constant 0 : index
    %c0_29 = arith.constant 0 : index
    %50 = vector.load %arg9[%c0_28, %c0_29] : memref<1x32xf32, #tpu.memory_space<vmem>>, vector<1x32xf32>
    %51 = arith.mulf %49, %49 : vector<128x32xf32>
    %cst_30 = arith.constant dense<0.000000e+00> : vector<32xf32>
    %52 = vector.multi_reduction <add>, %51, %cst_30 [0] : vector<128x32xf32> to vector<32xf32>
    %53 = vector.shape_cast %52 : vector<32xf32> to vector<1x32xf32>
    %54 = arith.addf %50, %53 : vector<1x32xf32>
    %c0_31 = arith.constant 0 : index
    %c0_32 = arith.constant 0 : index
    %55 = vector.load %arg9[%c0_31, %c0_32] : memref<1x32xf32, #tpu.memory_space<vmem>>, vector<1x32xf32>
    tpu.vector_store %arg9[%c0_31, %c0_32], %54 {strides = array<i32>} : memref<1x32xf32, #tpu.memory_space<vmem>>, vector<1x32xf32>,
    %c0_i32_33 = arith.constant 0 : i32
    %56 = arith.cmpi eq, %arg1, %c0_i32_33 : i32
    %57 = arith.extui %56 : i1 to i32
    %c0_i32_34 = arith.constant 0 : i32
    %58 = arith.cmpi ne, %57, %c0_i32_34 : i32
    scf.if %58 {
      %c0_35 = arith.constant 0 : index
      %c0_36 = arith.constant 0 : index
      %59 = vector.load %arg7[%c0_35, %c0_36] : memref<1x128xf32, #tpu.memory_space<vmem>>, vector<1x128xf32>
      %60 = vector.shape_cast %59 : vector<1x128xf32> to vector<1x1x128xf32>
      %cst_37 = arith.constant dense<0.000000e+00> : vector<1xf32>
      %61 = vector.multi_reduction <add>, %60, %cst_37 [1, 2] : vector<1x1x128xf32> to vector<1xf32>
      %62 = vector.shape_cast %61 : vector<1xf32> to vector<1x1x1xf32>
      %63 = vector.extract %62[0, 0, 0] : f32 from vector<1x1x1xf32>
      %cst_38 = arith.constant 1.250000e-01 : f32
      %64 = arith.mulf %63, %cst_38 : f32
      %c0_39 = arith.constant 0 : index
      %c0_40 = arith.constant 0 : index
      %65 = vector.load %arg8[%c0_39, %c0_40] : memref<1x128xf32, #tpu.memory_space<vmem>>, vector<1x128xf32>
      %66 = vector.shape_cast %65 : vector<1x128xf32> to vector<1x1x128xf32>
      %cst_41 = arith.constant dense<0.000000e+00> : vector<1xf32>
      %67 = vector.multi_reduction <add>, %66, %cst_41 [1, 2] : vector<1x1x128xf32> to vector<1xf32>
      %68 = vector.shape_cast %67 : vector<1xf32> to vector<1x1x1xf32>
      %69 = vector.extract %68[0, 0, 0] : f32 from vector<1x1x1xf32>
      %cst_42 = arith.constant 1.250000e-01 : f32
      %70 = arith.mulf %69, %cst_42 : f32
      %cst_43 = arith.constant 0.000000e+00 : f32
      %71 = arith.subf %cst_43, %70 : f32
      %c0_44 = arith.constant 0 : index
      %c0_45 = arith.constant 0 : index
      %72 = vector.load %arg9[%c0_44, %c0_45] : memref<1x32xf32, #tpu.memory_space<vmem>>, vector<1x32xf32>
      %73 = vector.shape_cast %72 : vector<1x32xf32> to vector<1x1x32xf32>
      %cst_46 = arith.constant dense<0.000000e+00> : vector<1xf32>
      %74 = vector.multi_reduction <add>, %73, %cst_46 [1, 2] : vector<1x1x32xf32> to vector<1xf32>
      %75 = vector.shape_cast %74 : vector<1xf32> to vector<1x1x1xf32>
      %76 = vector.extract %75[0, 0, 0] : f32 from vector<1x1x1xf32>
      %cst_47 = arith.constant 3.33333332E-6 : f32
      %77 = arith.mulf %cst_47, %76 : f32
      %cst_48 = arith.constant 5.000000e-01 : f32
      %78 = arith.mulf %cst_48, %64 : f32
      %cst_49 = arith.constant 5.000000e-01 : f32
      %79 = arith.mulf %cst_49, %71 : f32
      %80 = arith.addf %78, %79 : f32
      %81 = arith.addf %80, %77 : f32
      %82 = vector.broadcast %81 : f32 to vector<1x1x128xf32>
      %c0_50 = arith.constant 0 : index
      %c0_51 = arith.constant 0 : index
      %c0_52 = arith.constant 0 : index
      %83 = vector.load %arg6[%c0_50, %c0_51, %c0_52] : memref<1x1x128xf32, #tpu.memory_space<vmem>>, vector<1x1x128xf32>
      tpu.vector_store %arg6[%c0_50, %c0_51, %c0_52], %82 {strides = array<i32>} : memref<1x1x128xf32, #tpu.memory_space<vmem>>, vector<1x1x128xf32>,
    } else {
    }
    return
  }
  func.func @transform_0(%arg0: i32, %arg1: i32) -> (i32, i32) {
    %c1_i32 = arith.constant 1 : i32
    %0 = arith.muli %arg0, %c1_i32 : i32
    %1 = arith.addi %0, %arg1 : i32
    %c0_i32 = arith.constant 0 : i32
    %c0_i32_0 = arith.constant 0 : i32
    return %c0_i32, %1 : i32, i32
  }
  func.func @transform_1(%arg0: i32, %arg1: i32) -> (i32, i32) {
    %c1_i32 = arith.constant 1 : i32
    %0 = arith.muli %arg0, %c1_i32 : i32
    %1 = arith.addi %0, %arg1 : i32
    %c0_i32 = arith.constant 0 : i32
    %c0_i32_0 = arith.constant 0 : i32
    return %1, %c0_i32 : i32, i32
  }
  func.func @transform_2(%arg0: i32, %arg1: i32) -> (i32, i32) {
    %c1_i32 = arith.constant 1 : i32
    %0 = arith.muli %arg0, %c1_i32 : i32
    %1 = arith.addi %0, %arg1 : i32
    %c0_i32 = arith.constant 0 : i32
    %c0_i32_0 = arith.constant 0 : i32
    return %1, %c0_i32 : i32, i32
  }
  func.func @transform_3(%arg0: i32, %arg1: i32) -> (i32, i32) {
    %c1_i32 = arith.constant 1 : i32
    %0 = arith.muli %arg0, %c1_i32 : i32
    %1 = arith.addi %0, %arg1 : i32
    %c0_i32 = arith.constant 0 : i32
    %c0_i32_0 = arith.constant 0 : i32
    return %1, %c0_i32 : i32, i32
  }
  func.func @transform_4(%arg0: i32, %arg1: i32) -> (i32, i32, i32) {
    %c0_i32 = arith.constant 0 : i32
    %c0_i32_0 = arith.constant 0 : i32
    %c0_i32_1 = arith.constant 0 : i32
    return %arg0, %c0_i32, %c0_i32_0 : i32, i32, i32
  }
}

</mosaic_0001>

<llo_original>
// kernel: tpu_custom_call.1
$region0: #{tpu_custom_call.1}
  #allocation0 [shape = 'u32[]', space=smem, size = 0x4, offset = 0x4, fixed_abs, tag = 'smem constant byte address 0x4 - core index']
  #allocation1 [shape = 'u32[144,128]{1,0:T(1,128)}', space=vmem, size = 0x12000, scoped, tag = 'internal scratch']
  #allocation2 [shape = 'f32[1,128]{1,0:T(1,128)}', space=vmem, size = 0x200, scoped, tag = 'scratch operand']
  #allocation3 [shape = 'f32[1,128]{1,0:T(1,128)}', space=vmem, size = 0x200, scoped, tag = 'scratch operand']
  #allocation4 [shape = 'f32[1,32]{1,0:T(1,128)}', space=vmem, size = 0x200, scoped, tag = 'scratch operand']
  %s0 = inlined_call_operand.vmem [shape: f32[4,128], index: 0, kind: input, shape index: {}]
  %s1 = inlined_call_operand.vmem [shape: f32[128,32], index: 1, kind: input, shape index: {}]
  %s2 = inlined_call_operand.vmem [shape: f32[128,32], index: 2, kind: input, shape index: {}]
  %s3 = inlined_call_operand.vmem [shape: f32[128,32], index: 3, kind: input, shape index: {}]
  %s4 = inlined_call_operand.hbm [shape: f32[1,1,128], index: 4, kind: output, shape index: {}]
  %s5 = sld [smem:[#allocation0]]
  $region34: #{tpu_custom_call.1} parent=0
    _
  %s7 = ssub.s32 1, %s5
  %s8 = scalar_select 0, %s7, %s5
  $region1: #{tpu_custom_call.1} parent=0
    #allocation5 [shape = 'u8[512]{0}', space=vmem, size = 0x400, scoped, tag = 'output window, operand 0, single buffered']
    #allocation6 [shape = 's32[1]{0}', space=sflag, size = 0x4, scoped, tag = 'scoped memory for tpu_custom_call.1']
    %9 = vsyncpa [#allocation6], 0
    // Predicated region
    $region2: #{tpu_custom_call.1} parent=1 // pred_check
      _
    $region3: #{tpu_custom_call.1} parent=1 // pred_check_branch
      %11 = sbr.rel (0) target = $region5
    $region4: #{tpu_custom_call.1} parent=1 // pred_region
      %s12 = sadd.s32 0, 0
      %p13 = scmp.lt.s32.totalorder %s12, 0
      %s14 = scalar_select %p13, %s12, 0
      %s15 = smul.addr %s14, 4
      %s16 = scalar_lea.vmem %s0, %s15
      %s17 = sadd.s32 0, 0
    $region5: #{tpu_custom_call.1} parent=1 // pred_fallthru
      _
    // Predicated region
    $region6: #{tpu_custom_call.1} parent=1 // pred_check
      _
    $region7: #{tpu_custom_call.1} parent=1 // pred_check_branch
      %19 = sbr.rel (0) target = $region9
    $region8: #{tpu_custom_call.1} parent=1 // pred_region
      %s20 = sadd.s32 0, 0
      %s21 = smul.u32 16, %s20
      %p22 = scmp.lt.s32.totalorder %s21, 15
      %s23 = scalar_select %p22, %s21, 15
      %s24 = smul.addr %s23, 8
      %s25 = scalar_lea.vmem %s1, %s24
      %s26 = sadd.s32 0, 0
      %s27 = smul.u32 16, %s26
    $region9: #{tpu_custom_call.1} parent=1 // pred_fallthru
      _
    // Predicated region
    $region10: #{tpu_custom_call.1} parent=1 // pred_check
      _
    $region11: #{tpu_custom_call.1} parent=1 // pred_check_branch
      %29 = sbr.rel (0) target = $region13
    $region12: #{tpu_custom_call.1} parent=1 // pred_region
      %s30 = sadd.s32 0, 0
      %s31 = smul.u32 16, %s30
      %p32 = scmp.lt.s32.totalorder %s31, 15
      %s33 = scalar_select %p32, %s31, 15
      %s34 = smul.addr %s33, 8
      %s35 = scalar_lea.vmem %s2, %s34
      %s36 = sadd.s32 0, 0
      %s37 = smul.u32 16, %s36
    $region13: #{tpu_custom_call.1} parent=1 // pred_fallthru
      _
    // Predicated region
    $region14: #{tpu_custom_call.1} parent=1 // pred_check
      _
    $region15: #{tpu_custom_call.1} parent=1 // pred_check_branch
      %39 = sbr.rel (0) target = $region17
    $region16: #{tpu_custom_call.1} parent=1 // pred_region
      %s40 = sadd.s32 0, 0
      %s41 = smul.u32 16, %s40
      %p42 = scmp.lt.s32.totalorder %s41, 15
      %s43 = scalar_select %p42, %s41, 15
      %s44 = smul.addr %s43, 8
      %s45 = scalar_lea.vmem %s3, %s44
      %s46 = sadd.s32 0, 0
      %s47 = smul.u32 16, %s46
    $region17: #{tpu_custom_call.1} parent=1 // pred_fallthru
      _
    %s48 = sadd.s32 0, 0
    %p49 = scmp.lt.s32.totalorder %s48, 0
    %s50 = scalar_select %p49, %s48, 0
    %s51 = smul.addr %s50, 4
    %s52 = scalar_lea.vmem %s0, %s51
    %s53 = sadd.s32 0, 0
    %s54 = smul.u32 16, %s53
    %p55 = scmp.lt.s32.totalorder %s54, 15
    %s56 = scalar_select %p55, %s54, 15
    %s57 = smul.addr %s56, 8
    %s58 = scalar_lea.vmem %s1, %s57
    %s59 = sadd.s32 0, 0
    %s60 = smul.u32 16, %s59
    %p61 = scmp.lt.s32.totalorder %s60, 15
    %s62 = scalar_select %p61, %s60, 15
    %s63 = smul.addr %s62, 8
    %s64 = scalar_lea.vmem %s2, %s63
    %s65 = sadd.s32 0, 0
    %s66 = smul.u32 16, %s65
    %p67 = scmp.lt.s32.totalorder %s66, 15
    %s68 = scalar_select %p67, %s66, 15
    %s69 = smul.addr %s68, 8
    %s70 = scalar_lea.vmem %s3, %s69
    %s71 = sadd.s32 0, 0
    %p72 = scmp.lt.s32.totalorder %s71, 0
    %s73 = scalar_select %p72, %s71, 0
    %s74 = smul.addr %s73, 4
    %s75 = scalar_lea.vmem %s0, %s74
    %s76 = sadd.s32 0, 0
    %s77 = sadd.s32 0, 0
    %s78 = smul.u32 16, %s77
    %p79 = scmp.lt.s32.totalorder %s78, 15
    %s80 = scalar_select %p79, %s78, 15
    %s81 = smul.addr %s80, 8
    %s82 = scalar_lea.vmem %s1, %s81
    %s83 = sadd.s32 0, 0
    %s84 = smul.u32 16, %s83
    %s85 = sadd.s32 0, 0
    %s86 = smul.u32 16, %s85
    %p87 = scmp.lt.s32.totalorder %s86, 15
    %s88 = scalar_select %p87, %s86, 15
    %s89 = smul.addr %s88, 8
    %s90 = scalar_lea.vmem %s2, %s89
    %s91 = sadd.s32 0, 0
    %s92 = smul.u32 16, %s91
    %s93 = sadd.s32 0, 0
    %s94 = smul.u32 16, %s93
    %p95 = scmp.lt.s32.totalorder %s94, 15
    %s96 = scalar_select %p95, %s94, 15
    %s97 = smul.addr %s96, 8
    %s98 = scalar_lea.vmem %s3, %s97
    %s99 = sadd.s32 0, 0
    %s100 = smul.u32 16, %s99
    %p101 = scmp.eq.s32.totalorder 0, 0
    // Predicated region
    $region18: #{tpu_custom_call.1} parent=1 // pred_check
      %p102 = pneg %p101
    $region19: #{tpu_custom_call.1} parent=1 // pred_check_branch
      %104 = sbr.rel (%p102) target = $region21
    $region20: #{tpu_custom_call.1} parent=1 // pred_region
      %105 = vst [vmem:[#allocation2] sm:$0x1] 0.0
      %106 = vst [vmem:[#allocation3] sm:$0x1] 0.0
      %vm107 = vcmask 253952
      %108 = vst.msk [vmem:[#allocation4] sm:$0x1] %vm107, 0.0
    $region21: #{tpu_custom_call.1} parent=1 // pred_fallthru
      _
    %s109 = sadd.s32 0, 0
    %s110 = smul.u32 %s109, 128
    %v111 = vld [vmem:[%s75] sm:$0xf]
    %v113 = vrot.slane %v111, 1
    %v115 = vsub.f32 %v111, %v113
    %v116 = vld [vmem:[#allocation2] sm:$0x1]
    %v117 = vmul.f32 %v115, %v115
    %v118 = vadd.f32 %v116, %v117
    %119 = vst [vmem:[#allocation2] sm:$0x1] %v118
    %v120 = vlaneseq
    %v121 = vand.u32 %v120, 127
    %v122 = vstv %s110
    %v123 = vadd.s32 %v121, %v122
    %vm124 = vcmp.lt.s32.totalorder %v123, 8
    %v125 = vxor.u32 %v115, 2147483648
    %v126 = vmul.f32 %v125, 1.442695
    %v127 = vpow.pop %v126
    %v128 = vadd.f32 %v127, 1.0
    %v129 = vrcp.pop %v128
    %v130 = vmul.f32 1.0, %v129
    %v131 = vadd.f32 %v130, 1e-08
    %v132 = vlog2.pop %v131
    %v133 = vmul.f32 %v132, 0.6931472
    %v134 = vld [vmem:[#allocation3] sm:$0x1]
    %v135 = vsel %vm124, %v133, 0.0
    %v138 = vunpack.c.l.s4 1966171168
    %v139 = vunpack.c.0.s8 %v138
    %v140 = vlaneseq
    %v141 = vshrl.u32 %v140, 7
    %v142 = vsub.s32 %v139, %v141
    %v143 = vrot.slane %v135, %v142
    %v145 = vunpack.c.l.s4 1966171168
    %v146 = vunpack.c.0.s8 %v145
    %v147 = vlaneseq
    %v148 = vshrl.u32 %v147, 7
    %v149 = vsub.s32 %v146, %v148
    %v150 = vrot.slane %v143, %v149
    %v151 = vcombine.high %v150, %v150
    %v153 = vadd.f32 %v134, %v151
    %154 = vst [vmem:[#allocation3] sm:$0x1] %v153
    %v155 = vld [vmem:[%s82] sm:$0xff]
    %v156 = vld [vmem:[%s82 + $0x8] sm:$0xff]
    %v157 = vld [vmem:[%s82 + $0x10] sm:$0xff]
    %v158 = vld [vmem:[%s82 + $0x18] sm:$0xff]
    %v159 = vld [vmem:[%s82 + $0x20] sm:$0xff]
    %v160 = vld [vmem:[%s82 + $0x28] sm:$0xff]
    %v161 = vld [vmem:[%s82 + $0x30] sm:$0xff]
    %v162 = vld [vmem:[%s82 + $0x38] sm:$0xff]
    %v163 = vld [vmem:[%s82 + $0x40] sm:$0xff]
    %v164 = vld [vmem:[%s82 + $0x48] sm:$0xff]
    %v165 = vld [vmem:[%s82 + $0x50] sm:$0xff]
    %v166 = vld [vmem:[%s82 + $0x58] sm:$0xff]
    %v167 = vld [vmem:[%s82 + $0x60] sm:$0xff]
    %v168 = vld [vmem:[%s82 + $0x68] sm:$0xff]
    %v169 = vld [vmem:[%s82 + $0x70] sm:$0xff]
    %v170 = vld [vmem:[%s82 + $0x78] sm:$0xff]
    %v171 = vld [vmem:[#allocation4] sm:$0x1]
    %v172 = vmul.f32 %v155, %v155
    %v173 = vmul.f32 %v156, %v156
    %v174 = vmul.f32 %v157, %v157
    %v175 = vmul.f32 %v158, %v158
    %v176 = vmul.f32 %v159, %v159
    %v177 = vmul.f32 %v160, %v160
    %v178 = vmul.f32 %v161, %v161
    %v179 = vmul.f32 %v162, %v162
    %v180 = vmul.f32 %v163, %v163
    %v181 = vmul.f32 %v164, %v164
    %v182 = vmul.f32 %v165, %v165
    %v183 = vmul.f32 %v166, %v166
    %v184 = vmul.f32 %v167, %v167
    %v185 = vmul.f32 %v168, %v168
    %v186 = vmul.f32 %v169, %v169
    %v187 = vmul.f32 %v170, %v170
    %vm188 = vcmask 261120
    %v189 = vsel %vm188, %v172, 0.0
    %v190 = vsel %vm188, %v173, 0.0
    %v191 = vadd.f32 %v189, %v190
    %v192 = vsel %vm188, %v174, 0.0
    %v193 = vadd.f32 %v191, %v192
    %v194 = vsel %vm188, %v175, 0.0
    %v195 = vadd.f32 %v193, %v194
    %v196 = vsel %vm188, %v176, 0.0
    %v197 = vadd.f32 %v195, %v196
    %v198 = vsel %vm188, %v177, 0.0
    %v199 = vadd.f32 %v197, %v198
    %v200 = vsel %vm188, %v178, 0.0
    %v201 = vadd.f32 %v199, %v200
    %v202 = vsel %vm188, %v179, 0.0
    %v203 = vadd.f32 %v201, %v202
    %v204 = vsel %vm188, %v180, 0.0
    %v205 = vadd.f32 %v203, %v204
    %v206 = vsel %vm188, %v181, 0.0
    %v207 = vadd.f32 %v205, %v206
    %v208 = vsel %vm188, %v182, 0.0
    %v209 = vadd.f32 %v207, %v208
    %v210 = vsel %vm188, %v183, 0.0
    %v211 = vadd.f32 %v209, %v210
    %v212 = vsel %vm188, %v184, 0.0
    %v213 = vadd.f32 %v211, %v212
    %v214 = vsel %vm188, %v185, 0.0
    %v215 = vadd.f32 %v213, %v214
    %v216 = vsel %vm188, %v186, 0.0
    %v217 = vadd.f32 %v215, %v216
    %v218 = vsel %vm188, %v187, 0.0
    %v219 = vadd.f32 %v217, %v218
    %v220 = vrot.slane %v219, 4
    %v221 = vadd.f32 %v219, %v220
    %v222 = vrot.slane %v221, 2
    %v223 = vadd.f32 %v221, %v222
    %v224 = vrot.slane %v223, 1
    %v225 = vadd.f32 %v223, %v224
    %v226 = vadd.f32 %v171, %v225
    %vm227 = vcmask 253952
    %228 = vst.msk [vmem:[#allocation4] sm:$0x1] %vm227, %v226
    %v229 = vld [vmem:[%s90] sm:$0xff]
    %v230 = vld [vmem:[%s90 + $0x8] sm:$0xff]
    %v231 = vld [vmem:[%s90 + $0x10] sm:$0xff]
    %v232 = vld [vmem:[%s90 + $0x18] sm:$0xff]
    %v233 = vld [vmem:[%s90 + $0x20] sm:$0xff]
    %v234 = vld [vmem:[%s90 + $0x28] sm:$0xff]
    %v235 = vld [vmem:[%s90 + $0x30] sm:$0xff]
    %v236 = vld [vmem:[%s90 + $0x38] sm:$0xff]
    %v237 = vld [vmem:[%s90 + $0x40] sm:$0xff]
    %v238 = vld [vmem:[%s90 + $0x48] sm:$0xff]
    %v239 = vld [vmem:[%s90 + $0x50] sm:$0xff]
    %v240 = vld [vmem:[%s90 + $0x58] sm:$0xff]
    %v241 = vld [vmem:[%s90 + $0x60] sm:$0xff]
    %v242 = vld [vmem:[%s90 + $0x68] sm:$0xff]
    %v243 = vld [vmem:[%s90 + $0x70] sm:$0xff]
    %v244 = vld [vmem:[%s90 + $0x78] sm:$0xff]
    %v245 = vld [vmem:[#allocation4] sm:$0x1]
    %v246 = vmul.f32 %v229, %v229
    %v247 = vmul.f32 %v230, %v230
    %v248 = vmul.f32 %v231, %v231
    %v249 = vmul.f32 %v232, %v232
    %v250 = vmul.f32 %v233, %v233
    %v251 = vmul.f32 %v234, %v234
    %v252 = vmul.f32 %v235, %v235
    %v253 = vmul.f32 %v236, %v236
    %v254 = vmul.f32 %v237, %v237
    %v255 = vmul.f32 %v238, %v238
    %v256 = vmul.f32 %v239, %v239
    %v257 = vmul.f32 %v240, %v240
    %v258 = vmul.f32 %v241, %v241
    %v259 = vmul.f32 %v242, %v242
    %v260 = vmul.f32 %v243, %v243
    %v261 = vmul.f32 %v244, %v244
    %v262 = vsel %vm188, %v246, 0.0
    %v263 = vsel %vm188, %v247, 0.0
    %v264 = vadd.f32 %v262, %v263
    %v265 = vsel %vm188, %v248, 0.0
    %v266 = vadd.f32 %v264, %v265
    %v267 = vsel %vm188, %v249, 0.0
    %v268 = vadd.f32 %v266, %v267
    %v269 = vsel %vm188, %v250, 0.0
    %v270 = vadd.f32 %v268, %v269
    %v271 = vsel %vm188, %v251, 0.0
    %v272 = vadd.f32 %v270, %v271
    %v273 = vsel %vm188, %v252, 0.0
    %v274 = vadd.f32 %v272, %v273
    %v275 = vsel %vm188, %v253, 0.0
    %v276 = vadd.f32 %v274, %v275
    %v277 = vsel %vm188, %v254, 0.0
    %v278 = vadd.f32 %v276, %v277
    %v279 = vsel %vm188, %v255, 0.0
    %v280 = vadd.f32 %v278, %v279
    %v281 = vsel %vm188, %v256, 0.0
    %v282 = vadd.f32 %v280, %v281
    %v283 = vsel %vm188, %v257, 0.0
    %v284 = vadd.f32 %v282, %v283
    %v285 = vsel %vm188, %v258, 0.0
    %v286 = vadd.f32 %v284, %v285
    %v287 = vsel %vm188, %v259, 0.0
    %v288 = vadd.f32 %v286, %v287
    %v289 = vsel %vm188, %v260, 0.0
    %v290 = vadd.f32 %v288, %v289
    %v291 = vsel %vm188, %v261, 0.0
    %v292 = vadd.f32 %v290, %v291
    %v293 = vrot.slane %v292, 4
    %v294 = vadd.f32 %v292, %v293
    %v295 = vrot.slane %v294, 2
    %v296 = vadd.f32 %v294, %v295
    %v297 = vrot.slane %v296, 1
    %v298 = vadd.f32 %v296, %v297
    %v299 = vadd.f32 %v245, %v298
    %300 = vst.msk [vmem:[#allocation4] sm:$0x1] %vm227, %v299
    %v301 = vld [vmem:[%s98] sm:$0xff]
    %v302 = vld [vmem:[%s98 + $0x8] sm:$0xff]
    %v303 = vld [vmem:[%s98 + $0x10] sm:$0xff]
    %v304 = vld [vmem:[%s98 + $0x18] sm:$0xff]
    %v305 = vld [vmem:[%s98 + $0x20] sm:$0xff]
    %v306 = vld [vmem:[%s98 + $0x28] sm:$0xff]
    %v307 = vld [vmem:[%s98 + $0x30] sm:$0xff]
    %v308 = vld [vmem:[%s98 + $0x38] sm:$0xff]
    %v309 = vld [vmem:[%s98 + $0x40] sm:$0xff]
    %v310 = vld [vmem:[%s98 + $0x48] sm:$0xff]
    %v311 = vld [vmem:[%s98 + $0x50] sm:$0xff]
    %v312 = vld [vmem:[%s98 + $0x58] sm:$0xff]
    %v313 = vld [vmem:[%s98 + $0x60] sm:$0xff]
    %v314 = vld [vmem:[%s98 + $0x68] sm:$0xff]
    %v315 = vld [vmem:[%s98 + $0x70] sm:$0xff]
    %v316 = vld [vmem:[%s98 + $0x78] sm:$0xff]
    %v317 = vld [vmem:[#allocation4] sm:$0x1]
    %v318 = vmul.f32 %v301, %v301
    %v319 = vmul.f32 %v302, %v302
    %v320 = vmul.f32 %v303, %v303
    %v321 = vmul.f32 %v304, %v304
    %v322 = vmul.f32 %v305, %v305
    %v323 = vmul.f32 %v306, %v306
    %v324 = vmul.f32 %v307, %v307
    %v325 = vmul.f32 %v308, %v308
    %v326 = vmul.f32 %v309, %v309
    %v327 = vmul.f32 %v310, %v310
    %v328 = vmul.f32 %v311, %v311
    %v329 = vmul.f32 %v312, %v312
    %v330 = vmul.f32 %v313, %v313
    %v331 = vmul.f32 %v314, %v314
    %v332 = vmul.f32 %v315, %v315
    %v333 = vmul.f32 %v316, %v316
    %v334 = vsel %vm188, %v318, 0.0
    %v335 = vsel %vm188, %v319, 0.0
    %v336 = vadd.f32 %v334, %v335
    %v337 = vsel %vm188, %v320, 0.0
    %v338 = vadd.f32 %v336, %v337
    %v339 = vsel %vm188, %v321, 0.0
    %v340 = vadd.f32 %v338, %v339
    %v341 = vsel %vm188, %v322, 0.0
    %v342 = vadd.f32 %v340, %v341
    %v343 = vsel %vm188, %v323, 0.0
    %v344 = vadd.f32 %v342, %v343
    %v345 = vsel %vm188, %v324, 0.0
    %v346 = vadd.f32 %v344, %v345
    %v347 = vsel %vm188, %v325, 0.0
    %v348 = vadd.f32 %v346, %v347
    %v349 = vsel %vm188, %v326, 0.0
    %v350 = vadd.f32 %v348, %v349
    %v351 = vsel %vm188, %v327, 0.0
    %v352 = vadd.f32 %v350, %v351
    %v353 = vsel %vm188, %v328, 0.0
    %v354 = vadd.f32 %v352, %v353
    %v355 = vsel %vm188, %v329, 0.0
    %v356 = vadd.f32 %v354, %v355
    %v357 = vsel %vm188, %v330, 0.0
    %v358 = vadd.f32 %v356, %v357
    %v359 = vsel %vm188, %v331, 0.0
    %v360 = vadd.f32 %v358, %v359
    %v361 = vsel %vm188, %v332, 0.0
    %v362 = vadd.f32 %v360, %v361
    %v363 = vsel %vm188, %v333, 0.0
    %v364 = vadd.f32 %v362, %v363
    %v365 = vrot.slane %v364, 4
    %v366 = vadd.f32 %v364, %v365
    %v367 = vrot.slane %v366, 2
    %v368 = vadd.f32 %v366, %v367
    %v369 = vrot.slane %v368, 1
    %v370 = vadd.f32 %v368, %v369
    %v371 = vadd.f32 %v317, %v370
    %372 = vst.msk [vmem:[#allocation4] sm:$0x1] %vm227, %v371
    // Predicated region
    $region22: #{tpu_custom_call.1} parent=1 // pred_check
      %p373 = pneg %p101
    $region23: #{tpu_custom_call.1} parent=1 // pred_check_branch
      %375 = sbr.rel (%p373) target = $region25
    $region24: #{tpu_custom_call.1} parent=1 // pred_region
      %v376 = vld [vmem:[#allocation2] sm:$0x1]
      %vm377 = vcmask 1040384
      %v378 = vsel %vm377, %v376, 0.0
      %379 = vadd.xlane.f32.xlu0 %v378
      %v380 = vpop.xlane.xlu0 %379
      %v381 = vrot.slane %v380, 4
      %v382 = vadd.f32 %v380, %v381
      %v383 = vrot.slane %v382, 2
      %v384 = vadd.f32 %v382, %v383
      %v385 = vrot.slane %v384, 1
      %v386 = vadd.f32 %v384, %v385
      %s387 = vtos %v386
      %s388 = smul.f32 %s387, 0.125
      %v389 = vld [vmem:[#allocation3] sm:$0x1]
      %v390 = vsel %vm377, %v389, 0.0
      %391 = vadd.xlane.f32.xlu0 %v390
      %v392 = vpop.xlane.xlu0 %391
      %v393 = vrot.slane %v392, 4
      %v394 = vadd.f32 %v392, %v393
      %v395 = vrot.slane %v394, 2
      %v396 = vadd.f32 %v394, %v395
      %v397 = vrot.slane %v396, 1
      %v398 = vadd.f32 %v396, %v397
      %s399 = vtos %v398
      %s400 = smul.f32 %s399, 0.125
      %s401 = ssub.f32 0.0, %s400
      %v402 = vld [vmem:[#allocation4] sm:$0x1]
      %v403 = vsel %vm227, %v402, 0.0
      %404 = vadd.xlane.f32.xlu0 %v403
      %v405 = vpop.xlane.xlu0 %404
      %v406 = vrot.slane %v405, 4
      %v407 = vadd.f32 %v405, %v406
      %v408 = vrot.slane %v407, 2
      %v409 = vadd.f32 %v407, %v408
      %v410 = vrot.slane %v409, 1
      %v411 = vadd.f32 %v409, %v410
      %s412 = vtos %v411
      %s413 = smul.f32 %s412, 3.3333333e-06
      %s414 = smul.f32 %s388, 0.5
      %s415 = smul.f32 %s401, 0.5
      %s416 = sadd.f32 %s414, %s415
      %s417 = sadd.f32 %s416, %s413
      %v418 = vstv %s417
      %419 = vst [vmem:[#allocation5] sm:$0x1] %v418
    $region25: #{tpu_custom_call.1} parent=1 // pred_fallthru
      _
    // Predicated region
    $region26: #{tpu_custom_call.1} parent=1 // pred_check
      _
    $region27: #{tpu_custom_call.1} parent=1 // pred_check_branch
      %421 = sbr.rel (0) target = $region29
    $region28: #{tpu_custom_call.1} parent=1 // pred_region
      %s423 = ssub.s32 16, 16
      %424 = vsyncadd [#allocation6], %s423
      %s426 = sshll.u32 [#allocation5], 4
      %s427 = int_to_ptr.vmem [resolvable:$true] %s426
      %429 = dma.vmem_to_hbm [thread:$0]  %s427, 16, %s4, [#allocation6]
    $region29: #{tpu_custom_call.1} parent=1 // pred_fallthru
      _
    // Predicated region
    $region30: #{tpu_custom_call.1} parent=1 // pred_check
      _
    $region31: #{tpu_custom_call.1} parent=1 // pred_check_branch
      %431 = sbr.rel (0) target = $region33
    $region32: #{tpu_custom_call.1} parent=1 // pred_region
      %432 = dma.done [#allocation6], 16
    $region33: #{tpu_custom_call.1} parent=1 // pred_fallthru
      _
    %433 = vsyncpa [#allocation6], 1

</llo_original>
